<compile_context>
chip_gen: v7x
topology: tpu7x:2x2x1
jax: 0.10.0
libtpu: 0.0.40
codegen_flags: <defaults>
</compile_context>

<pallas_src>
import jax
import jax.numpy as jnp
from jax.experimental import pallas as pl
from jax.experimental.pallas import tpu as pltpu


def _lie_func_kernel(x_ref, wcat_ref, b_ref, y_ref, acc_ref, prev_ref, xcat_ref):
    # x_ref    : (bt, C, tl)   f32  input tile (NCL, time on lanes)
    # wcat_ref : (C, 2C)       cdt  [W0 | W1] so conv = Wcat @ [x_prev ; x]
    # b_ref    : (C, 1)        f32  conv bias
    # y_ref    : (bt, C, tl)   f32  output tile
    # acc_ref  : (bt, C, 1)    f32  running cumsum carried across chunks/tiles
    # prev_ref : (bt, C, 1)    f32  last time column of the previous chunk/tile
    # xcat_ref : (bt, 2C, sub) cdt  staging for the fused conv operand
    lt = pl.program_id(1)

    @pl.when(lt == 0)
    def _():
        acc_ref[...] = jnp.zeros_like(acc_ref)
        prev_ref[...] = jnp.zeros_like(prev_ref)

    bt, c, tl = x_ref.shape
    sub = xcat_ref.shape[-1]
    n_chunks = tl // sub
    cdt = xcat_ref.dtype

    wcat = wcat_ref[...]
    bias = b_ref[...]

    # Upper-triangular ones (sub, sub): (pos @ u)[:, t] = sum_{s <= t} pos[:, s].
    # Built in-kernel from iotas; never touches HBM or double-buffered VMEM.
    row = jax.lax.broadcasted_iota(jnp.int32, (sub, sub), 0)
    col = jax.lax.broadcasted_iota(jnp.int32, (sub, sub), 1)
    u = (row <= col).astype(cdt)
    lane0 = jax.lax.broadcasted_iota(jnp.int32, (1, 1, sub), 2) == 0

    for j in range(n_chunks):                       # static, tl // sub <= 4
        sl = slice(j * sub, (j + 1) * sub)
        x = x_ref[:, :, sl]                         # (bt, C, sub) f32

        # x_prev[..., t] = x[..., t-1]; column 0 comes from the previous chunk's
        # last column (zero for the very first chunk == conv's left zero pad).
        rolled = pltpu.roll(x, shift=1, axis=2)
        x_prev = jnp.where(lane0, prev_ref[...], rolled)

        # Stage the fused conv operand [x_prev ; x] with static, C-aligned
        # slice stores (no sublane concatenates).
        xcat_ref[:, :c, :] = x_prev.astype(cdt)
        xcat_ref[:, c:, :] = x.astype(cdt)

        for b in range(bt):                         # static, small batch tile
            # Conv1d(k=2) + bias, ReLU, residual: one (C,2C)@(2C,sub) MXU matmul.
            conv = jnp.dot(wcat, xcat_ref[b],
                           preferred_element_type=jnp.float32) + bias
            pos_b = x[b] + jnp.maximum(conv, 0.0)               # (C, sub) f32
            # Sub-chunk cumsum as one (C,sub)@(sub,sub) MXU matmul + f32 carry.
            y_b = jnp.dot(pos_b.astype(cdt), u,
                          preferred_element_type=jnp.float32) + acc_ref[b]
            y_ref[b, :, sl] = y_b
            acc_ref[b] = y_b[:, sub - 1:sub]

        prev_ref[...] = x[:, :, sub - 1:sub]


def _round_up(n, m):
    return -(-n // m) * m


def _choose_time_tiling(L):
    """DMA tile width tl and the zero-padded length.  The tile is chosen for
    lane-dense DMA/store efficiency, not VMEM (the in-kernel cumsum is
    sub-chunked, so MXU work does not grow with tl)."""
    for cand in (512, 256, 128):
        if L >= cand and L % cand == 0:
            return cand, L
    if L <= 128:
        return 128, 128
    tl = 512 if L >= 2048 else (256 if L >= 512 else 128)
    return tl, _round_up(L, tl)


def _pick_batch_tile(B, C):
    """Batch rows per grid step.  Aim for a few hundred sublane rows of work,
    but keep >= 2 steps on the leading 'parallel' axis whenever B >= 2 so both
    v7x TensorCores get work (v5e/v6e single-TC unaffected)."""
    target = max(1, 256 // max(C, 1))
    if B >= 2:
        target = min(target, B // 2)
    target = max(target, 1)
    bt = 1
    for d in range(1, min(B, target) + 1):
        if B % d == 0:
            bt = d
    return bt


def lie_func_basic_optimized(x, weight, bias, *, tl=None, bt=None, sub=None,
                             compute_dtype=jnp.float32):
    """x: (B, d_model, L) (NCL, as PyTorch Conv1d expects)
       weight: (d_model, d_model, 2) (out, in, k);  bias: (d_model,)
       compute_dtype: dtype of the MXU matmul operands (jnp.bfloat16 is the
         fast path on v6e/v7x; accumulation/carries/outputs stay f32).
       sub: in-tile cumsum chunk width (default 256; use 128 on v5e).
       returns (B, d_model, L) f32."""
    B, C, L = x.shape
    x = x.astype(jnp.float32)

    if tl is None:
        tl, L_pad = _choose_time_tiling(L)
    else:
        L_pad = _round_up(L, tl)
    if L_pad != L:
        # Trailing zero-padding: the cumsum is causal and the conv taps are
        # {t-1, t}, so padded columns never affect the first L outputs.
        x = jnp.pad(x, ((0, 0), (0, 0), (0, L_pad - L)))

    bt = _pick_batch_tile(B, C) if bt is None else bt
    sub = min(256, tl) if sub is None else min(sub, tl)
    assert L_pad % tl == 0 and B % bt == 0 and tl % sub == 0

    # conv = [W0 | W1] @ [x_prev ; x]: stack the two taps along K (wrapper-side).
    w_cat = jnp.concatenate([weight[:, :, 0], weight[:, :, 1]],
                            axis=1).astype(compute_dtype)            # (C, 2C)
    b2 = bias.reshape(C, 1).astype(jnp.float32)

    out = pl.pallas_call(
        _lie_func_kernel,
        out_shape=jax.ShapeDtypeStruct((B, C, L_pad), jnp.float32),
        grid_spec=pltpu.PrefetchScalarGridSpec(
            num_scalar_prefetch=0,
            grid=(B // bt, L_pad // tl),        # batch parallel, time sequential
            in_specs=[
                pl.BlockSpec((bt, C, tl), lambda i, j: (i, 0, j)),    # x tile
                pl.BlockSpec((C, 2 * C), lambda i, j: (0, 0)),        # [W0|W1]
                pl.BlockSpec((C, 1), lambda i, j: (0, 0)),            # bias
            ],
            out_specs=pl.BlockSpec((bt, C, tl), lambda i, j: (i, 0, j)),
            scratch_shapes=[
                pltpu.VMEM((bt, C, 1), jnp.float32),         # running cumsum carry
                pltpu.VMEM((bt, C, 1), jnp.float32),         # previous time column
                pltpu.VMEM((bt, 2 * C, sub), compute_dtype), # fused conv operand
            ],
        ),
        compiler_params=pltpu.CompilerParams(
            dimension_semantics=("parallel", "arbitrary"),
            vmem_limit_bytes=24 * 1024 * 1024,   # actual footprint ~3-4 MiB
        ),
    )(x, w_cat, b2)
    return out[:, :, :L] if L_pad != L else out


def _reference(x, weight, bias):
    # Plain-JAX NCL reference matching the torch semantics exactly.
    hi = jax.lax.Precision.HIGHEST
    x_prev = jnp.pad(x, ((0, 0), (0, 0), (1, 0)))[:, :, :-1]        # left zero pad
    conv = (jnp.einsum('oc,bcl->bol', weight[:, :, 0], x_prev, precision=hi)
            + jnp.einsum('oc,bcl->bol', weight[:, :, 1], x, precision=hi)
            + bias[None, :, None])
    pos = x + jax.nn.relu(conv)
    return jnp.cumsum(pos, axis=2)


if __name__ == "__main__":
    key = jax.random.PRNGKey(0)

    # --- small shape consistent with the module (B=2, d_model=32, L=16) ---
    B, d_model, L = 2, 32, 16
    kx, kw, kb, key = jax.random.split(key, 4)
    bound = 1.0 / jnp.sqrt(jnp.float32(d_model * 2))   # PyTorch Conv1d init range
    weight = jax.random.uniform(kw, (d_model, d_model, 2), jnp.float32, -bound, bound)
    bias = jax.random.uniform(kb, (d_model,), jnp.float32, -bound, bound)
    x = jax.random.normal(kx, (B, d_model, L), jnp.float32)

    y = jax.block_until_ready(lie_func_basic_optimized(x, weight, bias))
    y_ref = _reference(x, weight, bias)
    assert y.shape == (B, d_model, L)
    assert jnp.allclose(y, y_ref, atol=1e-4, rtol=1e-4), "small-shape mismatch"

    # --- larger shape: 2 time tiles (tl=512), 2 cumsum sub-chunks (sub=256),
    #     2 batch tiles (bt=2) -> exercises all carries -------------------------
    B2, C2, L2 = 4, 64, 1024
    kx2, kw2, kb2, key = jax.random.split(key, 4)
    bound2 = 1.0 / jnp.sqrt(jnp.float32(C2 * 2))
    weight2 = jax.random.uniform(kw2, (C2, C2, 2), jnp.float32, -bound2, bound2)
    bias2 = jax.random.uniform(kb2, (C2,), jnp.float32, -bound2, bound2)
    x2 = jax.random.normal(kx2, (B2, C2, L2), jnp.float32)

    y2 = jax.block_until_ready(lie_func_basic_optimized(x2, weight2, bias2))
    y2_ref = _reference(x2, weight2, bias2)
    assert jnp.allclose(y2, y2_ref, atol=2e-3, rtol=2e-3), "tiled-shape mismatch"

    # --- ragged L (exercises the zero-pad + slice-off path) -------------------
    B3, C3, L3 = 2, 32, 200
    kx3, key = jax.random.split(key, 2)
    x3 = jax.random.normal(kx3, (B3, C3, L3), jnp.float32)
    y3 = jax.block_until_ready(lie_func_basic_optimized(x3, weight, bias))
    y3_ref = _reference(x3, weight, bias)
    assert y3.shape == (B3, C3, L3)
    assert jnp.allclose(y3, y3_ref, atol=1e-3, rtol=1e-3), "ragged-L mismatch"

    # --- bf16 MXU-operand fast path (v6e/v7x); carries/accum stay f32 ---------
    y2b = jax.block_until_ready(
        lie_func_basic_optimized(x2, weight2, bias2, compute_dtype=jnp.bfloat16))
    assert jnp.allclose(y2b, y2_ref, atol=0.5, rtol=0.05), "bf16-path mismatch"

    print("KERNEL_OK")
</pallas_src>

<mosaic_0001>
module attributes {stable_mosaic.version = 11 : i64} {
  func.func @_lie_func_kernel(%arg0: i32, %arg1: i32, %arg2: memref<1x32x128xf32, #tpu.memory_space<vmem>>, %arg3: memref<32x64xf32, #tpu.memory_space<vmem>>, %arg4: memref<32x1xf32, #tpu.memory_space<vmem>>, %arg5: memref<1x32x128xf32, #tpu.memory_space<vmem>>, %arg6: memref<1x32x1xf32, #tpu.memory_space<vmem>>, %arg7: memref<1x32x1xf32, #tpu.memory_space<vmem>>, %arg8: memref<1x64x128xf32, #tpu.memory_space<vmem>>) attributes {dimension_semantics = [#tpu.dimension_semantics<parallel>, #tpu.dimension_semantics<arbitrary>], iteration_bounds = array<i64: 2, 1>, scalar_prefetch = 0 : i64, scratch_operands = 3 : i64, tpu.core_type = #tpu.core_type<tc>, window_params = [{transform_indices = @transform_0, window_bounds = array<i64: 1, 32, 128>}, {pipeline_mode = #tpu.pipeline_mode<synchronous>, transform_indices = @transform_1, window_bounds = array<i64: 32, 64>}, {pipeline_mode = #tpu.pipeline_mode<synchronous>, transform_indices = @transform_2, window_bounds = array<i64: 32, 1>}, {transform_indices = @transform_3, window_bounds = array<i64: 1, 32, 128>}]} {
    %c0_i32 = arith.constant 0 : i32
    %0 = arith.cmpi eq, %arg1, %c0_i32 : i32
    %1 = arith.extui %0 : i1 to i32
    %c0_i32_0 = arith.constant 0 : i32
    %2 = arith.cmpi ne, %1, %c0_i32_0 : i32
    scf.if %2 {
      %cst_33 = arith.constant 0.000000e+00 : f32
      %46 = vector.broadcast %cst_33 : f32 to vector<1x32x1xf32>
      %c0_34 = arith.constant 0 : index
      %c0_35 = arith.constant 0 : index
      %c0_36 = arith.constant 0 : index
      %47 = vector.load %arg6[%c0_34, %c0_35, %c0_36] : memref<1x32x1xf32, #tpu.memory_space<vmem>>, vector<1x32x1xf32>
      tpu.vector_store %arg6[%c0_34, %c0_35, %c0_36], %46 {strides = array<i32>} : memref<1x32x1xf32, #tpu.memory_space<vmem>>, vector<1x32x1xf32>,
      %cst_37 = arith.constant 0.000000e+00 : f32
      %48 = vector.broadcast %cst_37 : f32 to vector<1x32x1xf32>
      %c0_38 = arith.constant 0 : index
      %c0_39 = arith.constant 0 : index
      %c0_40 = arith.constant 0 : index
      %49 = vector.load %arg7[%c0_38, %c0_39, %c0_40] : memref<1x32x1xf32, #tpu.memory_space<vmem>>, vector<1x32x1xf32>
      tpu.vector_store %arg7[%c0_38, %c0_39, %c0_40], %48 {strides = array<i32>} : memref<1x32x1xf32, #tpu.memory_space<vmem>>, vector<1x32x1xf32>,
    } else {
    }
    %c0 = arith.constant 0 : index
    %c0_1 = arith.constant 0 : index
    %3 = vector.load %arg3[%c0, %c0_1] : memref<32x64xf32, #tpu.memory_space<vmem>>, vector<32x64xf32>
    %c0_2 = arith.constant 0 : index
    %c0_3 = arith.constant 0 : index
    %4 = vector.load %arg4[%c0_2, %c0_3] : memref<32x1xf32, #tpu.memory_space<vmem>>, vector<32x1xf32>
    %5 = tpu.iota {dimensions = array<i32: 0>} : vector<128x128xi32>
    %6 = tpu.iota {dimensions = array<i32: 1>} : vector<128x128xi32>
    %7 = arith.cmpi sle, %5, %6 : vector<128x128xi32>
    %8 = arith.extui %7 : vector<128x128xi1> to vector<128x128xi32>
    %9 = arith.sitofp %8 : vector<128x128xi32> to vector<128x128xf32>
    %10 = tpu.iota {dimensions = array<i32: 2>} : vector<1x1x128xi32>
    %c0_i32_4 = arith.constant 0 : i32
    %11 = vector.broadcast %c0_i32_4 : i32 to vector<1x1x128xi32>
    %12 = arith.cmpi eq, %10, %11 : vector<1x1x128xi32>
    %c0_5 = arith.constant 0 : index
    %c0_6 = arith.constant 0 : index
    %c0_7 = arith.constant 0 : index
    %13 = vector.load %arg2[%c0_5, %c0_6, %c0_7] : memref<1x32x128xf32, #tpu.memory_space<vmem>>, vector<1x32x128xf32>
    %c1_i32 = arith.constant 1 : i32
    %14 = tpu.dynamic_rotate %13 by %c1_i32 dim 2 : vector<1x32x128xf32>, i32 -> vector<1x32x128xf32>
    %c0_8 = arith.constant 0 : index
    %c0_9 = arith.constant 0 : index
    %c0_10 = arith.constant 0 : index
    %15 = vector.load %arg7[%c0_8, %c0_9, %c0_10] : memref<1x32x1xf32, #tpu.memory_space<vmem>>, vector<1x32x1xf32>
    %16 = vector.shape_cast %12 : vector<1x1x128xi1> to vector<1x1x128xi1>
    %17 = vector.broadcast %16 : vector<1x1x128xi1> to vector<1x32x128xi1>
    %18 = vector.shape_cast %15 : vector<1x32x1xf32> to vector<1x32x1xf32>
    %19 = vector.broadcast %18 : vector<1x32x1xf32> to vector<1x32x128xf32>
    %20 = arith.select %17, %19, %14 : vector<1x32x128xi1>, vector<1x32x128xf32>
    %c0_11 = arith.constant 0 : index
    %c0_12 = arith.constant 0 : index
    %c0_13 = arith.constant 0 : index
    %21 = vector.load %arg8[%c0_11, %c0_12, %c0_13] : memref<1x64x128xf32, #tpu.memory_space<vmem>>, vector<1x32x128xf32>
    tpu.vector_store %arg8[%c0_11, %c0_12, %c0_13], %20 {strides = array<i32>} : memref<1x64x128xf32, #tpu.memory_space<vmem>>, vector<1x32x128xf32>,
    %c0_14 = arith.constant 0 : index
    %c32 = arith.constant 32 : index
    %c0_15 = arith.constant 0 : index
    %22 = vector.load %arg8[%c0_14, %c32, %c0_15] : memref<1x64x128xf32, #tpu.memory_space<vmem>>, vector<1x32x128xf32>
    tpu.vector_store %arg8[%c0_14, %c32, %c0_15], %13 {strides = array<i32>} : memref<1x64x128xf32, #tpu.memory_space<vmem>>, vector<1x32x128xf32>,
    %c0_16 = arith.constant 0 : index
    %c0_17 = arith.constant 0 : index
    %c0_18 = arith.constant 0 : index
    %23 = vector.load %arg8[%c0_16, %c0_17, %c0_18] : memref<1x64x128xf32, #tpu.memory_space<vmem>>, vector<1x64x128xf32>
    %24 = vector.shape_cast %23 : vector<1x64x128xf32> to vector<64x128xf32>
    %cst = arith.constant dense<0.000000e+00> : vector<32x128xf32>
    %25 = tpu.matmul %3, %24, %cst {dimension_numbers = #tpu.dot_dimension_numbers<[1], [0], [0], [1], [0, 0, 1, 1], [], []>} : vector<32x64xf32>, vector<64x128xf32>, vector<32x128xf32> -> vector<32x128xf32>
    %26 = vector.broadcast %4 : vector<32x1xf32> to vector<32x128xf32>
    %27 = arith.addf %25, %26 : vector<32x128xf32>
    %28 = vector.shape_cast %13 : vector<1x32x128xf32> to vector<32x128xf32>
    %cst_19 = arith.constant 0.000000e+00 : f32
    %29 = vector.broadcast %cst_19 : f32 to vector<32x128xf32>
    %30 = arith.maximumf %27, %29 : vector<32x128xf32>
    %31 = arith.addf %28, %30 : vector<32x128xf32>
    %cst_20 = arith.constant dense<0.000000e+00> : vector<32x128xf32>
    %32 = tpu.matmul %31, %9, %cst_20 {dimension_numbers = #tpu.dot_dimension_numbers<[1], [0], [0], [1], [0, 0, 1, 1], [], []>} : vector<32x128xf32>, vector<128x128xf32>, vector<32x128xf32> -> vector<32x128xf32>
    %c0_21 = arith.constant 0 : index
    %c0_22 = arith.constant 0 : index
    %c0_23 = arith.constant 0 : index
    %33 = vector.load %arg6[%c0_21, %c0_22, %c0_23] : memref<1x32x1xf32, #tpu.memory_space<vmem>>, vector<1x32x1xf32>
    %34 = vector.shape_cast %33 : vector<1x32x1xf32> to vector<32x1xf32>
    %35 = vector.broadcast %34 : vector<32x1xf32> to vector<32x128xf32>
    %36 = arith.addf %32, %35 : vector<32x128xf32>
    %c0_24 = arith.constant 0 : index
    %c0_25 = arith.constant 0 : index
    %c0_26 = arith.constant 0 : index
    %37 = vector.load %arg5[%c0_24, %c0_25, %c0_26] : memref<1x32x128xf32, #tpu.memory_space<vmem>>, vector<1x32x128xf32>
    %38 = vector.shape_cast %37 : vector<1x32x128xf32> to vector<32x128xf32>
    %39 = vector.shape_cast %36 : vector<32x128xf32> to vector<1x32x128xf32>
    tpu.vector_store %arg5[%c0_24, %c0_25, %c0_26], %39 {strides = array<i32>} : memref<1x32x128xf32, #tpu.memory_space<vmem>>, vector<1x32x128xf32>,
    %40 = vector.extract_strided_slice %36 {offsets = [0, 127], sizes = [32, 1], strides = [1, 1]} : vector<32x128xf32> to vector<32x1xf32>
    %c0_27 = arith.constant 0 : index
    %c0_28 = arith.constant 0 : index
    %c0_29 = arith.constant 0 : index
    %41 = vector.load %arg6[%c0_27, %c0_28, %c0_29] : memref<1x32x1xf32, #tpu.memory_space<vmem>>, vector<1x32x1xf32>
    %42 = vector.shape_cast %41 : vector<1x32x1xf32> to vector<32x1xf32>
    %43 = vector.shape_cast %40 : vector<32x1xf32> to vector<1x32x1xf32>
    tpu.vector_store %arg6[%c0_27, %c0_28, %c0_29], %43 {strides = array<i32>} : memref<1x32x1xf32, #tpu.memory_space<vmem>>, vector<1x32x1xf32>,
    %44 = vector.extract_strided_slice %13 {offsets = [0, 0, 127], sizes = [1, 32, 1], strides = [1, 1, 1]} : vector<1x32x128xf32> to vector<1x32x1xf32>
    %c0_30 = arith.constant 0 : index
    %c0_31 = arith.constant 0 : index
    %c0_32 = arith.constant 0 : index
    %45 = vector.load %arg7[%c0_30, %c0_31, %c0_32] : memref<1x32x1xf32, #tpu.memory_space<vmem>>, vector<1x32x1xf32>
    tpu.vector_store %arg7[%c0_30, %c0_31, %c0_32], %44 {strides = array<i32>} : memref<1x32x1xf32, #tpu.memory_space<vmem>>, vector<1x32x1xf32>,
    return
  }
  func.func @transform_0(%arg0: i32, %arg1: i32) -> (i32, i32, i32) {
    %c0_i32 = arith.constant 0 : i32
    %c0_i32_0 = arith.constant 0 : i32
    return %arg0, %c0_i32, %arg1 : i32, i32, i32
  }
  func.func @transform_1(%arg0: i32, %arg1: i32) -> (i32, i32) {
    %c0_i32 = arith.constant 0 : i32
    %c0_i32_0 = arith.constant 0 : i32
    %c0_i32_1 = arith.constant 0 : i32
    return %c0_i32, %c0_i32_0 : i32, i32
  }
  func.func @transform_2(%arg0: i32, %arg1: i32) -> (i32, i32) {
    %c0_i32 = arith.constant 0 : i32
    %c0_i32_0 = arith.constant 0 : i32
    %c0_i32_1 = arith.constant 0 : i32
    return %c0_i32, %c0_i32_0 : i32, i32
  }
  func.func @transform_3(%arg0: i32, %arg1: i32) -> (i32, i32, i32) {
    %c0_i32 = arith.constant 0 : i32
    %c0_i32_0 = arith.constant 0 : i32
    return %arg0, %c0_i32, %arg1 : i32, i32, i32
  }
}

</mosaic_0001>

<llo_original>
// kernel: tpu_custom_call.1
$region0: #{tpu_custom_call.1}
  #allocation0 [shape = 'u32[]', space=smem, size = 0x4, offset = 0x4, fixed_abs, tag = 'smem constant byte address 0x4 - core index']
  #allocation1 [shape = 'u32[144,128]{1,0:T(1,128)}', space=vmem, size = 0x12000, scoped, tag = 'internal scratch']
  #allocation2 [shape = 'f32[1,32,1]{2,1,0:T(8,128)}', space=vmem, size = 0x4000, scoped, tag = 'scratch operand']
  #allocation3 [shape = 'f32[1,32,1]{2,1,0:T(8,128)}', space=vmem, size = 0x4000, scoped, tag = 'scratch operand']
  #allocation4 [shape = 'f32[1,64,128]{2,1,0:T(8,128)}', space=vmem, size = 0x8000, scoped, tag = 'scratch operand']
  %s0 = inlined_call_operand.hbm [shape: f32[2,32,128], index: 0, kind: input, shape index: {}]
  %s1 = inlined_call_operand.vmem [shape: f32[32,64], index: 1, kind: input, shape index: {}]
  %s2 = inlined_call_operand.vmem [shape: f32[32,1], index: 2, kind: input, shape index: {}]
  %s3 = inlined_call_operand.hbm [shape: f32[2,32,128], index: 3, kind: output, shape index: {}]
  %s4 = sld [smem:[#allocation0]]
  $region53: #{tpu_custom_call.1} parent=0
    _
  %s6 = ssub.s32 1, %s4
  %s7 = scalar_select 0, %s6, %s4
  $region1: #{tpu_custom_call.1} parent=0
    #allocation5 [shape = 'u8[32768]{0}', space=vmem, size = 0x8000, scoped, tag = 'input window, operand 0']
    #allocation6 [shape = 's32[2]{0}', space=sflag, size = 0x8, scoped, tag = 'scoped memory for tpu_custom_call.1']
    #allocation7 [shape = 's32[2]{0}', space=sflag, size = 0x8, scoped, tag = 'scoped memory for tpu_custom_call.1']
    #allocation8 [shape = 'u8[32768]{0}', space=vmem, size = 0x8000, scoped, tag = 'output window, operand 0']
    %8 = vsyncpa [#allocation6], 0
    %s9 = scalar_lea.sflag [#allocation6], 1
    %10 = vsyncpa %s9, 0
    %11 = vsyncpa [#allocation7], 0
    %s12 = scalar_lea.sflag [#allocation7], 1
    %13 = vsyncpa %s12, 0
    loop: start=0, step=1, limit=4
    $region2: #{tpu_custom_call.1} parent=1 // loop_pre_header
      _
    $region3: #{tpu_custom_call.1} parent=1 // loop_header
      %s15 = sphi 0, %s19
      %p16 = scmp.ge.s32.totalorder %s15, 4
      %s22 = sphi 0, %s34
      %s23 = sphi 0, %s30
      %s24 = sphi 0, %s22
      %s25 = sphi 0, %s23
      %s26 = sphi 0, %s24
      %s27 = sphi 0, %s25
      %s39 = sphi 0, %s41
      %s42 = sphi 0, %s39
      %s43 = sphi 0, %s42
      %s59 = sphi 0, %s43
      %s63 = sphi 0, %s63
      %s65 = sphi 0, %s63
      %s66 = sphi 0, %s65
      %s80 = sphi 0, %s66
      %s84 = sphi 0, %s84
      %s86 = sphi 0, %s84
      %s87 = sphi 0, %s86
      %s101 = sphi 0, %s87
      %s109 = sphi 0, %s111
      %s112 = sphi 0, %s109
      %s113 = sphi 0, %s112
      %s129 = sphi 0, %s113
    $region4: #{tpu_custom_call.1} parent=1 // loop_header_branch
      %18 = sbr.rel (%p16) target = $region8
    $region5: #{tpu_custom_call.1} parent=1 // loop_body
      %s20 = ssub.s32 %s15, 1
      %s21 = ssub.s32 %s15, 2
      %s28 = sadd.s32 1, %s23
      %p29 = scmp.ge.s32.totalorder %s28, 1
      %s30 = scalar_select %p29, 0, %s28
      %s31 = sadd.s32 1, %s22
      %s32 = scalar_select %p29, %s31, %s22
      %p33 = scmp.ge.s32.totalorder %s32, 2
      %s34 = scalar_select %p33, 0, %s32
      %s35 = ssub.s32 %s22, %s34
      %s36 = ssub.s32 %s23, %s30
      %s37 = sor.u32 %s35, %s36
      %p38 = scmp.eq.s32.totalorder %s37, 0
      %s40 = sadd.s32 %s39, 1
      %s41 = scalar_select %p38, %s39, %s40
      %p44 = pneg %p38
      %p45 = scmp.eq.s32.totalorder %s15, 1
      %p46 = por %p44, %p45
      %p47 = scmp.ne.s32.totalorder %s39, %s42
      %p48 = scmp.eq.s32.totalorder %s15, 0
      %p49 = por %p47, %p48
      %p50 = scmp.ne.s32.totalorder %s39, %s42
      %p51 = scmp.eq.s32.totalorder %s20, 1
      %p52 = por %p50, %p51
      %p53 = scmp.ne.s32.totalorder %s42, %s43
      %p54 = scmp.eq.s32.totalorder %s20, 0
      %p55 = por %p53, %p54
      %p56 = scmp.ne.s32.totalorder %s42, %s43
      %p57 = scmp.eq.s32.totalorder %s21, 1
      %p58 = por %p56, %p57
      %p60 = scmp.ne.s32.totalorder %s43, %s59
      %p61 = scmp.eq.s32.totalorder %s21, 0
      %p62 = por %p60, %p61
      %s64 = sadd.s32 %s63, 1
      %p67 = scmp.eq.s32.totalorder %s15, 1
      %p68 = scmp.ne.s32.totalorder %s63, %s65
      %p69 = scmp.eq.s32.totalorder %s15, 0
      %p70 = por %p68, %p69
      %p71 = scmp.ne.s32.totalorder %s63, %s65
      %p72 = scmp.eq.s32.totalorder %s20, 1
      %p73 = por %p71, %p72
      %p74 = scmp.ne.s32.totalorder %s65, %s66
      %p75 = scmp.eq.s32.totalorder %s20, 0
      %p76 = por %p74, %p75
      %p77 = scmp.ne.s32.totalorder %s65, %s66
      %p78 = scmp.eq.s32.totalorder %s21, 1
      %p79 = por %p77, %p78
      %p81 = scmp.ne.s32.totalorder %s66, %s80
      %p82 = scmp.eq.s32.totalorder %s21, 0
      %p83 = por %p81, %p82
      %s85 = sadd.s32 %s84, 1
      %p88 = scmp.eq.s32.totalorder %s15, 1
      %p89 = scmp.ne.s32.totalorder %s84, %s86
      %p90 = scmp.eq.s32.totalorder %s15, 0
      %p91 = por %p89, %p90
      %p92 = scmp.ne.s32.totalorder %s84, %s86
      %p93 = scmp.eq.s32.totalorder %s20, 1
      %p94 = por %p92, %p93
      %p95 = scmp.ne.s32.totalorder %s86, %s87
      %p96 = scmp.eq.s32.totalorder %s20, 0
      %p97 = por %p95, %p96
      %p98 = scmp.ne.s32.totalorder %s86, %s87
      %p99 = scmp.eq.s32.totalorder %s21, 1
      %p100 = por %p98, %p99
      %p102 = scmp.ne.s32.totalorder %s87, %s101
      %p103 = scmp.eq.s32.totalorder %s21, 0
      %p104 = por %p102, %p103
      %s105 = ssub.s32 %s22, %s34
      %s106 = ssub.s32 %s23, %s30
      %s107 = sor.u32 %s105, %s106
      %p108 = scmp.eq.s32.totalorder %s107, 0
      %s110 = sadd.s32 %s109, 1
      %s111 = scalar_select %p108, %s109, %s110
      %p114 = pneg %p108
      %p115 = scmp.eq.s32.totalorder %s15, 1
      %p116 = por %p114, %p115
      %p117 = scmp.ne.s32.totalorder %s109, %s112
      %p118 = scmp.eq.s32.totalorder %s15, 0
      %p119 = por %p117, %p118
      %p120 = scmp.ne.s32.totalorder %s109, %s112
      %p121 = scmp.eq.s32.totalorder %s20, 1
      %p122 = por %p120, %p121
      %p123 = scmp.ne.s32.totalorder %s112, %s113
      %p124 = scmp.eq.s32.totalorder %s20, 0
      %p125 = por %p123, %p124
      %p126 = scmp.ne.s32.totalorder %s112, %s113
      %p127 = scmp.eq.s32.totalorder %s21, 1
      %p128 = por %p126, %p127
      %p130 = scmp.ne.s32.totalorder %s113, %s129
      %p131 = scmp.eq.s32.totalorder %s21, 0
      %p132 = por %p130, %p131
      %p133 = scmp.le.s32.totalorder 1, %s15
      %p134 = scmp.lt.s32.totalorder %s15, 3
      %p135 = pnand %p133, %p134
      %p136 = pneg %p135
      // Predicated region
      $region9: #{tpu_custom_call.1} parent=5 // pred_check
        _
      $region10: #{tpu_custom_call.1} parent=5 // pred_check_branch
        %138 = sbr.rel (%p135) target = $region12
      $region11: #{tpu_custom_call.1} parent=5 // pred_region
        %s139 = ssub.s32 %s15, 1
        // Predicated region
        $region13: #{tpu_custom_call.1} parent=11 // pred_check
          %p140 = pneg %p76
        $region14: #{tpu_custom_call.1} parent=11 // pred_check_branch
          %142 = sbr.rel (%p140) target = $region16
        $region15: #{tpu_custom_call.1} parent=11 // pred_region
          _
        $region16: #{tpu_custom_call.1} parent=11 // pred_fallthru
          _
        // Predicated region
        $region17: #{tpu_custom_call.1} parent=11 // pred_check
          %p143 = pneg %p97
        $region18: #{tpu_custom_call.1} parent=11 // pred_check_branch
          %145 = sbr.rel (%p143) target = $region20
        $region19: #{tpu_custom_call.1} parent=11 // pred_region
          _
        $region20: #{tpu_custom_call.1} parent=11 // pred_fallthru
          _
      $region12: #{tpu_custom_call.1} parent=5 // pred_fallthru
        _
      %p146 = scmp.lt.s32.totalorder %s15, 2
      // Predicated region
      $region21: #{tpu_custom_call.1} parent=5 // pred_check
        %p147 = pneg %p146
      $region22: #{tpu_custom_call.1} parent=5 // pred_check_branch
        %149 = sbr.rel (%p147) target = $region24
      $region23: #{tpu_custom_call.1} parent=5 // pred_region
        // Predicated region
        $region25: #{tpu_custom_call.1} parent=23 // pred_check
          %p150 = pneg %p49
        $region26: #{tpu_custom_call.1} parent=23 // pred_check_branch
          %152 = sbr.rel (%p150) target = $region28
        $region27: #{tpu_custom_call.1} parent=23 // pred_region
          %s153 = sand.u32 %s39, 1
          %s154 = scalar_lea.sflag [#allocation6], %s153
          %s155 = sand.u32 %s39, 1
          %s156 = smul.addr %s155, 32
          %s157 = scalar_lea.vmem [#allocation5], %s156
          %s159 = ssub.s32 512, 512
          %160 = vsyncadd %s154, %s159
          %s161 = smul.addr %s22, 4
          %s162 = sadd.s32 %s23, %s161
          %s163 = smul.addr %s162, 128
          %s164 = scalar_lea.hbm %s0, %s163
          %s165 = sshll.u32 %s157, 4
          %s166 = int_to_ptr.vmem [resolvable:$true] %s165
          %171 = dma.hbm_to_vmem [thread:$0]  %s164, 512, %s166, %s154, 128, 128, 8
        $region28: #{tpu_custom_call.1} parent=23 // pred_fallthru
          _
      $region24: #{tpu_custom_call.1} parent=5 // pred_fallthru
        _
      %p172 = scmp.le.s32.totalorder 1, %s15
      %p173 = scmp.lt.s32.totalorder %s15, 3
      %p174 = pnand %p172, %p173
      %p175 = pneg %p174
      // Predicated region
      $region29: #{tpu_custom_call.1} parent=5 // pred_check
        _
      $region30: #{tpu_custom_call.1} parent=5 // pred_check_branch
        %177 = sbr.rel (%p174) target = $region32
      $region31: #{tpu_custom_call.1} parent=5 // pred_region
        %s178 = ssub.s32 %s15, 1
        %s179 = sand.u32 %s42, 1
        %s180 = scalar_lea.sflag [#allocation6], %s179
        %s181 = sand.u32 %s42, 1
        %s182 = smul.addr %s181, 32
        %s183 = scalar_lea.vmem [#allocation5], %s182
        // Predicated region
        $region33: #{tpu_custom_call.1} parent=31 // pred_check
          %p184 = pneg %p55
        $region34: #{tpu_custom_call.1} parent=31 // pred_check_branch
          %186 = sbr.rel (%p184) target = $region36
        $region35: #{tpu_custom_call.1} parent=31 // pred_region
          %187 = dma.done %s180, 512
        $region36: #{tpu_custom_call.1} parent=31 // pred_fallthru
          _
        %s188 = sand.u32 %s42, 1
        %s189 = scalar_lea.sflag [#allocation6], %s188
        %s190 = sand.u32 %s42, 1
        %s191 = smul.addr %s190, 32
        %s192 = scalar_lea.vmem [#allocation5], %s191
        %p193 = pneg %p55
        %p194 = pneg %p52
        %p195 = pneg %p76
        %p196 = pneg %p73
        %p197 = pneg %p97
        %p198 = pneg %p94
        %p199 = pneg %p125
        %p200 = pneg %p122
        %s201 = sand.u32 %s112, 1
        %s202 = scalar_lea.sflag [#allocation7], %s201
        %s203 = sand.u32 %s112, 1
        %s204 = smul.addr %s203, 32
        %s205 = scalar_lea.vmem [#allocation8], %s204
        %p206 = scmp.eq.s32.totalorder %s25, 0
        // Predicated region
        $region37: #{tpu_custom_call.1} parent=31 // pred_check
          %p207 = pneg %p206
        $region38: #{tpu_custom_call.1} parent=31 // pred_check_branch
          %209 = sbr.rel (%p207) target = $region40
        $region39: #{tpu_custom_call.1} parent=31 // pred_region
          %vm210 = vcmask 7168
          %211 = vst.msk [vmem:[#allocation2] sm:$0xff] %vm210, 0.0
          %212 = vst.msk [vmem:[#allocation2 + $0x8] sm:$0xff] %vm210, 0.0
          %213 = vst.msk [vmem:[#allocation2 + $0x10] sm:$0xff] %vm210, 0.0
          %214 = vst.msk [vmem:[#allocation2 + $0x18] sm:$0xff] %vm210, 0.0
          %215 = vst.msk [vmem:[#allocation3] sm:$0xff] %vm210, 0.0
          %216 = vst.msk [vmem:[#allocation3 + $0x8] sm:$0xff] %vm210, 0.0
          %217 = vst.msk [vmem:[#allocation3 + $0x10] sm:$0xff] %vm210, 0.0
          %218 = vst.msk [vmem:[#allocation3 + $0x18] sm:$0xff] %vm210, 0.0
        $region40: #{tpu_custom_call.1} parent=31 // pred_fallthru
          _
        %v219 = vld [vmem:[%s1] sm:$0xff]
        %v220 = vld [vmem:[%s1 + $0x8] sm:$0xff]
        %v221 = vld [vmem:[%s1 + $0x10] sm:$0xff]
        %v222 = vld [vmem:[%s1 + $0x18] sm:$0xff]
        %v223 = vld [vmem:[%s2] sm:$0xff]
        %v224 = vld [vmem:[%s2 + $0x8] sm:$0xff]
        %v225 = vld [vmem:[%s2 + $0x10] sm:$0xff]
        %v226 = vld [vmem:[%s2 + $0x18] sm:$0xff]
        %v227 = vlaneseq
        %v228 = vshrl.u32 %v227, 7
        %v229 = vadd.s32 %v228, 8
        %v230 = vadd.s32 %v228, 16
        %v231 = vadd.s32 %v228, 24
        %v232 = vadd.s32 %v228, 32
        %v233 = vadd.s32 %v228, 40
        %v234 = vadd.s32 %v228, 48
        %v235 = vadd.s32 %v228, 56
        %v236 = vadd.s32 %v228, 64
        %v237 = vadd.s32 %v228, 72
        %v238 = vadd.s32 %v228, 80
        %v239 = vadd.s32 %v228, 88
        %v240 = vadd.s32 %v228, 96
        %v241 = vadd.s32 %v228, 104
        %v242 = vadd.s32 %v228, 112
        %v243 = vadd.s32 %v228, 120
        %v244 = vlaneseq
        %v245 = vand.u32 %v244, 127
        %vm246 = vcmp.le.s32.totalorder %v228, %v245
        %vm247 = vcmp.le.s32.totalorder %v229, %v245
        %vm248 = vcmp.le.s32.totalorder %v230, %v245
        %vm249 = vcmp.le.s32.totalorder %v231, %v245
        %vm250 = vcmp.le.s32.totalorder %v232, %v245
        %vm251 = vcmp.le.s32.totalorder %v233, %v245
        %vm252 = vcmp.le.s32.totalorder %v234, %v245
        %vm253 = vcmp.le.s32.totalorder %v235, %v245
        %vm254 = vcmp.le.s32.totalorder %v236, %v245
        %vm255 = vcmp.le.s32.totalorder %v237, %v245
        %vm256 = vcmp.le.s32.totalorder %v238, %v245
        %vm257 = vcmp.le.s32.totalorder %v239, %v245
        %vm258 = vcmp.le.s32.totalorder %v240, %v245
        %vm259 = vcmp.le.s32.totalorder %v241, %v245
        %vm260 = vcmp.le.s32.totalorder %v242, %v245
        %vm261 = vcmp.le.s32.totalorder %v243, %v245
        %v262 = vsel %vm246, 1, 0
        %v263 = vsel %vm247, 1, 0
        %v264 = vsel %vm248, 1, 0
        %v265 = vsel %vm249, 1, 0
        %v266 = vsel %vm250, 1, 0
        %v267 = vsel %vm251, 1, 0
        %v268 = vsel %vm252, 1, 0
        %v269 = vsel %vm253, 1, 0
        %v270 = vsel %vm254, 1, 0
        %v271 = vsel %vm255, 1, 0
        %v272 = vsel %vm256, 1, 0
        %v273 = vsel %vm257, 1, 0
        %v274 = vsel %vm258, 1, 0
        %v275 = vsel %vm259, 1, 0
        %v276 = vsel %vm260, 1, 0
        %v277 = vsel %vm261, 1, 0
        %v278 = vcvt.s32.f32 %v262
        %v279 = vcvt.s32.f32 %v263
        %v280 = vcvt.s32.f32 %v264
        %v281 = vcvt.s32.f32 %v265
        %v282 = vcvt.s32.f32 %v266
        %v283 = vcvt.s32.f32 %v267
        %v284 = vcvt.s32.f32 %v268
        %v285 = vcvt.s32.f32 %v269
        %v286 = vcvt.s32.f32 %v270
        %v287 = vcvt.s32.f32 %v271
        %v288 = vcvt.s32.f32 %v272
        %v289 = vcvt.s32.f32 %v273
        %v290 = vcvt.s32.f32 %v274
        %v291 = vcvt.s32.f32 %v275
        %v292 = vcvt.s32.f32 %v276
        %v293 = vcvt.s32.f32 %v277
        %vm294 = vcmp.eq.s32.totalorder %v245, 0
        %v295 = vld [vmem:[%s183] sm:$0xff]
        %v296 = vld [vmem:[%s183 + $0x8] sm:$0xff]
        %v297 = vld [vmem:[%s183 + $0x10] sm:$0xff]
        %v298 = vld [vmem:[%s183 + $0x18] sm:$0xff]
        %299 = vrot.lane.b32.xlu0 %v295, 1
        %v300 = vpop.permute.xlu0 %299
        %301 = vrot.lane.b32.xlu0 %v296, 1
        %v302 = vpop.permute.xlu0 %301
        %303 = vrot.lane.b32.xlu0 %v297, 1
        %v304 = vpop.permute.xlu0 %303
        %305 = vrot.lane.b32.xlu0 %v298, 1
        %v306 = vpop.permute.xlu0 %305
        %v307 = vld [vmem:[#allocation3] sm:$0xff]
        %v308 = vld [vmem:[#allocation3 + $0x8] sm:$0xff]
        %v309 = vld [vmem:[#allocation3 + $0x10] sm:$0xff]
        %v310 = vld [vmem:[#allocation3 + $0x18] sm:$0xff]
        %v311 = vsel %vm294, 1, 0
        %vm312 = vcmp.eq.s32.totalorder %v311, 1
        %314 = vset.pattern.permute.xlu0 0
        %315 = vperm.xlu0 %314, %v307
        %v316 = vpop.permute.xlu0 %315
        %319 = vset.pattern.permute.xlu0 0
        %320 = vperm.xlu0 %319, %v308
        %v321 = vpop.permute.xlu0 %320
        %324 = vset.pattern.permute.xlu0 0
        %325 = vperm.xlu0 %324, %v309
        %v326 = vpop.permute.xlu0 %325
        %329 = vset.pattern.permute.xlu0 0
        %330 = vperm.xlu0 %329, %v310
        %v331 = vpop.permute.xlu0 %330
        %v333 = vsel %vm312, %v316, %v300
        %v334 = vsel %vm312, %v321, %v302
        %v335 = vsel %vm312, %v326, %v304
        %v336 = vsel %vm312, %v331, %v306
        %337 = vst [vmem:[#allocation4] sm:$0xff] %v333
        %338 = vst [vmem:[#allocation4 + $0x8] sm:$0xff] %v334
        %339 = vst [vmem:[#allocation4 + $0x10] sm:$0xff] %v335
        %340 = vst [vmem:[#allocation4 + $0x18] sm:$0xff] %v336
        %341 = vst [vmem:[#allocation4 + $0x20] sm:$0xff] %v295
        %342 = vst [vmem:[#allocation4 + $0x28] sm:$0xff] %v296
        %343 = vst [vmem:[#allocation4 + $0x30] sm:$0xff] %v297
        %344 = vst [vmem:[#allocation4 + $0x38] sm:$0xff] %v298
        %v345 = vld [vmem:[#allocation4] sm:$0xff]
        %v346 = vld [vmem:[#allocation4 + $0x8] sm:$0xff]
        %v347 = vld [vmem:[#allocation4 + $0x10] sm:$0xff]
        %v348 = vld [vmem:[#allocation4 + $0x18] sm:$0xff]
        %v349 = vld [vmem:[#allocation4 + $0x20] sm:$0xff]
        %v350 = vld [vmem:[#allocation4 + $0x28] sm:$0xff]
        %v351 = vld [vmem:[#allocation4 + $0x30] sm:$0xff]
        %v352 = vld [vmem:[#allocation4 + $0x38] sm:$0xff]
        %354 = vset.pattern.permute.xlu0 0
        %355 = vperm.xlu0 %354, %v223
        %v356 = vpop.permute.xlu0 %355
        %359 = vset.pattern.permute.xlu0 0
        %360 = vperm.xlu0 %359, %v224
        %v361 = vpop.permute.xlu0 %360
        %364 = vset.pattern.permute.xlu0 0
        %365 = vperm.xlu0 %364, %v225
        %v366 = vpop.permute.xlu0 %365
        %369 = vset.pattern.permute.xlu0 0
        %370 = vperm.xlu0 %369, %v226
        %v371 = vpop.permute.xlu0 %370
        %vm373 = vcmask 523264
        %v375 = vsel %vm373, %v219, 0
        %v378 = vsel %vm373, %v220, 0
        %v381 = vsel %vm373, %v221, 0
        %v384 = vsel %vm373, %v222, 0
        %386 = vmatprep.subr.mxu0 0.0
        %387 = vmatpush1.msra.mxu0 %v345
        %388 = vmatprep.subr.mxu0 0.0
        %389 = vmatpush1.msra.mxu0 %v346
        %390 = vmatprep.subr.mxu0 0.0
        %391 = vmatpush1.msra.mxu0 %v347
        %392 = vmatprep.subr.mxu0 0.0
        %393 = vmatpush1.msra.mxu0 %v348
        %394 = vmatprep.subr.mxu0 0.0
        %395 = vmatpush1.msra.mxu0 %v349
        %396 = vmatprep.subr.mxu0 0.0
        %397 = vmatpush1.msra.mxu0 %v350
        %398 = vmatprep.subr.mxu0 0.0
        %399 = vmatpush1.msra.mxu0 %v351
        %400 = vmatprep.subr.mxu0 0.0
        %401 = vmatpush1.msra.mxu0 %v352
        %402 = vmatprep.subr.mxu0 0.0
        %403 = vmatpush1.msra.mxu0 0.0
        %404 = vmatprep.subr.mxu0 0.0
        %405 = vmatpush1.msra.mxu0 0.0
        %406 = vmatprep.subr.mxu0 0.0
        %407 = vmatpush1.msra.mxu0 0.0
        %408 = vmatprep.subr.mxu0 0.0
        %409 = vmatpush1.msra.mxu0 0.0
        %410 = vmatprep.subr.mxu0 0.0
        %411 = vmatpush1.msra.mxu0 0.0
        %412 = vmatprep.subr.mxu0 0.0
        %413 = vmatpush1.msra.mxu0 0.0
        %414 = vmatprep.subr.mxu0 0.0
        %415 = vmatpush1.msra.mxu0 0.0
        %416 = vmatprep.subr.mxu0 0.0
        %417 = vmatpush1.msra.mxu0 0.0
        %418 = vmatprep.subr.mxu0 0.0
        %419 = vmatpush1.msra.mxu0 0.0
        %420 = vmatprep.subr.mxu0 0.0
        %421 = vmatpush1.msra.mxu0 0.0
        %422 = vmatprep.subr.mxu0 0.0
        %423 = vmatpush1.msra.mxu0 0.0
        %424 = vmatprep.subr.mxu0 0.0
        %425 = vmatpush1.msra.mxu0 0.0
        %426 = vmatprep.subr.mxu0 0.0
        %427 = vmatpush1.msra.mxu0 0.0
        %428 = vmatprep.subr.mxu0 0.0
        %429 = vmatpush1.msra.mxu0 0.0
        %430 = vmatprep.subr.mxu0 0.0
        %431 = vmatpush1.msra.mxu0 0.0
        %432 = vmatprep.subr.mxu0 0.0
        %433 = vmatpush1.msra.mxu0 0.0
        %434 = vmatprep.subr.mxu0 0.0
        %435 = vmatpush1.msra.mxu0 0.0
        %436 = vmatprep.subr.mxu0 0.0
        %437 = vmatpush1.msra.mxu0 0.0
        %438 = vmatprep.subr.mxu0 0.0
        %439 = vmatpush1.msra.mxu0 0.0
        %440 = vmatprep.subr.mxu0 0.0
        %441 = vmatpush1.msra.mxu0 0.0
        %442 = vmatprep.subr.mxu0 0.0
        %443 = vmatpush1.msra.mxu0 0.0
        %444 = vmatprep.subr.mxu0 0.0
        %445 = vmatpush1.msra.mxu0 0.0
        %446 = vmatprep.subr.mxu0 0.0
        %447 = vmatpush1.msra.mxu0 0.0
        %448 = vmatprep.subr.mxu0 0.0
        %449 = vmatpush1.msra.mxu0 0.0
        %450 = vmatprep.mubr.f32.mxu0 0.0
        %451 = vmatmul.mubr.f32.gmra.mrb[0].mxu0 %v375
        %v452 = vpop.f32.mrb[0].mxu0
        %v453 = vadd.f32 %v356, %v452
        %v454 = vpop.f32.mrb[0].mxu0
        %455 = vmatprep.mubr.f32.mxu0 0.0
        %456 = vmatmul.mubr.f32.gmra.mrb[0].mxu0 %v378
        %v457 = vpop.f32.mrb[0].mxu0
        %v458 = vadd.f32 %v361, %v457
        %v459 = vpop.f32.mrb[0].mxu0
        %460 = vmatprep.mubr.f32.mxu0 0.0
        %461 = vmatmul.mubr.f32.gmra.mrb[0].mxu0 %v381
        %v462 = vpop.f32.mrb[0].mxu0
        %v463 = vadd.f32 %v366, %v462
        %v464 = vpop.f32.mrb[0].mxu0
        %465 = vmatprep.mubr.f32.mxu0 0.0
        %466 = vmatmul.mubr.f32.gmra.mrb[0].mxu0 %v384
        %v467 = vpop.f32.mrb[0].mxu0
        %v468 = vadd.f32 %v371, %v467
        %v469 = vpop.f32.mrb[0].mxu0
        %470 = vdwg.mxu0
        %v471 = vmax.f32 %v453, 0.0
        %v472 = vmax.f32 %v458, 0.0
        %v473 = vmax.f32 %v463, 0.0
        %v474 = vmax.f32 %v468, 0.0
        %v475 = vadd.f32 %v295, %v471
        %v476 = vadd.f32 %v296, %v472
        %v477 = vadd.f32 %v297, %v473
        %v478 = vadd.f32 %v298, %v474
        %v479 = vld [vmem:[#allocation2] sm:$0xff]
        %v480 = vld [vmem:[#allocation2 + $0x8] sm:$0xff]
        %v481 = vld [vmem:[#allocation2 + $0x10] sm:$0xff]
        %v482 = vld [vmem:[#allocation2 + $0x18] sm:$0xff]
        %484 = vset.pattern.permute.xlu0 0
        %485 = vperm.xlu0 %484, %v479
        %v486 = vpop.permute.xlu0 %485
        %489 = vset.pattern.permute.xlu0 0
        %490 = vperm.xlu0 %489, %v480
        %v491 = vpop.permute.xlu0 %490
        %494 = vset.pattern.permute.xlu0 0
        %495 = vperm.xlu0 %494, %v481
        %v496 = vpop.permute.xlu0 %495
        %499 = vset.pattern.permute.xlu0 0
        %500 = vperm.xlu0 %499, %v482
        %v501 = vpop.permute.xlu0 %500
        %503 = vmatprep.subr.mxu0 0.0
        %504 = vmatpush1.msra.mxu0 %v278
        %505 = vmatprep.subr.mxu0 0.0
        %506 = vmatpush1.msra.mxu0 %v279
        %507 = vmatprep.subr.mxu0 0.0
        %508 = vmatpush1.msra.mxu0 %v280
        %509 = vmatprep.subr.mxu0 0.0
        %510 = vmatpush1.msra.mxu0 %v281
        %511 = vmatprep.subr.mxu0 0.0
        %512 = vmatpush1.msra.mxu0 %v282
        %513 = vmatprep.subr.mxu0 0.0
        %514 = vmatpush1.msra.mxu0 %v283
        %515 = vmatprep.subr.mxu0 0.0
        %516 = vmatpush1.msra.mxu0 %v284
        %517 = vmatprep.subr.mxu0 0.0
        %518 = vmatpush1.msra.mxu0 %v285
        %519 = vmatprep.subr.mxu0 0.0
        %520 = vmatpush1.msra.mxu0 %v286
        %521 = vmatprep.subr.mxu0 0.0
        %522 = vmatpush1.msra.mxu0 %v287
        %523 = vmatprep.subr.mxu0 0.0
        %524 = vmatpush1.msra.mxu0 %v288
        %525 = vmatprep.subr.mxu0 0.0
        %526 = vmatpush1.msra.mxu0 %v289
        %527 = vmatprep.subr.mxu0 0.0
        %528 = vmatpush1.msra.mxu0 %v290
        %529 = vmatprep.subr.mxu0 0.0
        %530 = vmatpush1.msra.mxu0 %v291
        %531 = vmatprep.subr.mxu0 0.0
        %532 = vmatpush1.msra.mxu0 %v292
        %533 = vmatprep.subr.mxu0 0.0
        %534 = vmatpush1.msra.mxu0 %v293
        %535 = vmatprep.subr.mxu0 0.0
        %536 = vmatpush1.msra.mxu0 0.0
        %537 = vmatprep.subr.mxu0 0.0
        %538 = vmatpush1.msra.mxu0 0.0
        %539 = vmatprep.subr.mxu0 0.0
        %540 = vmatpush1.msra.mxu0 0.0
        %541 = vmatprep.subr.mxu0 0.0
        %542 = vmatpush1.msra.mxu0 0.0
        %543 = vmatprep.subr.mxu0 0.0
        %544 = vmatpush1.msra.mxu0 0.0
        %545 = vmatprep.subr.mxu0 0.0
        %546 = vmatpush1.msra.mxu0 0.0
        %547 = vmatprep.subr.mxu0 0.0
        %548 = vmatpush1.msra.mxu0 0.0
        %549 = vmatprep.subr.mxu0 0.0
        %550 = vmatpush1.msra.mxu0 0.0
        %551 = vmatprep.subr.mxu0 0.0
        %552 = vmatpush1.msra.mxu0 0.0
        %553 = vmatprep.subr.mxu0 0.0
        %554 = vmatpush1.msra.mxu0 0.0
        %555 = vmatprep.subr.mxu0 0.0
        %556 = vmatpush1.msra.mxu0 0.0
        %557 = vmatprep.subr.mxu0 0.0
        %558 = vmatpush1.msra.mxu0 0.0
        %559 = vmatprep.subr.mxu0 0.0
        %560 = vmatpush1.msra.mxu0 0.0
        %561 = vmatprep.subr.mxu0 0.0
        %562 = vmatpush1.msra.mxu0 0.0
        %563 = vmatprep.subr.mxu0 0.0
        %564 = vmatpush1.msra.mxu0 0.0
        %565 = vmatprep.subr.mxu0 0.0
        %566 = vmatpush1.msra.mxu0 0.0
        %567 = vmatprep.mubr.f32.mxu0 0.0
        %568 = vmatmul.mubr.f32.gmra.mrb[0].mxu0 %v475
        %v569 = vpop.f32.mrb[0].mxu0
        %v570 = vadd.f32 %v486, %v569
        %v571 = vpop.f32.mrb[0].mxu0
        %572 = vmatprep.mubr.f32.mxu0 0.0
        %573 = vmatmul.mubr.f32.gmra.mrb[0].mxu0 %v476
        %v574 = vpop.f32.mrb[0].mxu0
        %v575 = vadd.f32 %v491, %v574
        %v576 = vpop.f32.mrb[0].mxu0
        %577 = vmatprep.mubr.f32.mxu0 0.0
        %578 = vmatmul.mubr.f32.gmra.mrb[0].mxu0 %v477
        %v579 = vpop.f32.mrb[0].mxu0
        %v580 = vadd.f32 %v496, %v579
        %v581 = vpop.f32.mrb[0].mxu0
        %582 = vmatprep.mubr.f32.mxu0 0.0
        %583 = vmatmul.mubr.f32.gmra.mrb[0].mxu0 %v478
        %v584 = vpop.f32.mrb[0].mxu0
        %v585 = vadd.f32 %v501, %v584
        %v586 = vpop.f32.mrb[0].mxu0
        %587 = vdwg.mxu0
        %588 = vst [vmem:[%s205] sm:$0xff] %v570
        %589 = vst [vmem:[%s205 + $0x8] sm:$0xff] %v575
        %590 = vst [vmem:[%s205 + $0x10] sm:$0xff] %v580
        %591 = vst [vmem:[%s205 + $0x18] sm:$0xff] %v585
        %596 = vrot.lane.b32.xlu0 %v570, 1
        %v597 = vpop.permute.xlu0 %596
        %598 = vrot.lane.b32.xlu0 %v575, 1
        %v599 = vpop.permute.xlu0 %598
        %600 = vrot.lane.b32.xlu0 %v580, 1
        %v601 = vpop.permute.xlu0 %600
        %602 = vrot.lane.b32.xlu0 %v585, 1
        %v603 = vpop.permute.xlu0 %602
        %vm608 = vcmask 7168
        %609 = vst.msk [vmem:[#allocation2] sm:$0xff] %vm608, %v597
        %610 = vst.msk [vmem:[#allocation2 + $0x8] sm:$0xff] %vm608, %v599
        %611 = vst.msk [vmem:[#allocation2 + $0x10] sm:$0xff] %vm608, %v601
        %612 = vst.msk [vmem:[#allocation2 + $0x18] sm:$0xff] %vm608, %v603
        %617 = vrot.lane.b32.xlu0 %v295, 1
        %v618 = vpop.permute.xlu0 %617
        %619 = vrot.lane.b32.xlu0 %v296, 1
        %v620 = vpop.permute.xlu0 %619
        %621 = vrot.lane.b32.xlu0 %v297, 1
        %v622 = vpop.permute.xlu0 %621
        %623 = vrot.lane.b32.xlu0 %v298, 1
        %v624 = vpop.permute.xlu0 %623
        %629 = vst.msk [vmem:[#allocation3] sm:$0xff] %vm608, %v618
        %630 = vst.msk [vmem:[#allocation3 + $0x8] sm:$0xff] %vm608, %v620
        %631 = vst.msk [vmem:[#allocation3 + $0x10] sm:$0xff] %vm608, %v622
        %632 = vst.msk [vmem:[#allocation3 + $0x18] sm:$0xff] %vm608, %v624
        %s633 = sand.u32 %s112, 1
        %s634 = scalar_lea.sflag [#allocation7], %s633
        %s635 = sand.u32 %s112, 1
        %s636 = smul.addr %s635, 32
        %s637 = scalar_lea.vmem [#allocation8], %s636
        // Predicated region
        $region41: #{tpu_custom_call.1} parent=31 // pred_check
          %p638 = pneg %p122
        $region42: #{tpu_custom_call.1} parent=31 // pred_check_branch
          %640 = sbr.rel (%p638) target = $region44
        $region43: #{tpu_custom_call.1} parent=31 // pred_region
          %s642 = ssub.s32 512, 512
          %643 = vsyncadd %s634, %s642
          %s644 = smul.addr %s24, 4
          %s645 = sadd.s32 %s25, %s644
          %s646 = smul.addr %s645, 128
          %s647 = scalar_lea.hbm %s3, %s646
          %s648 = sshll.u32 %s637, 4
          %s649 = int_to_ptr.vmem [resolvable:$true] %s648
          %654 = dma.vmem_to_hbm [thread:$0]  %s649, 512, %s647, %s634, 128, 128, 8
        $region44: #{tpu_custom_call.1} parent=31 // pred_fallthru
          _
      $region32: #{tpu_custom_call.1} parent=5 // pred_fallthru
        _
      %p655 = scmp.le.s32.totalorder 2, %s15
      // Predicated region
      $region45: #{tpu_custom_call.1} parent=5 // pred_check
        %p656 = pneg %p655
      $region46: #{tpu_custom_call.1} parent=5 // pred_check_branch
        %658 = sbr.rel (%p656) target = $region48
      $region47: #{tpu_custom_call.1} parent=5 // pred_region
        %s659 = ssub.s32 %s15, 2
        // Predicated region
        $region49: #{tpu_custom_call.1} parent=47 // pred_check
          %p660 = pneg %p128
        $region50: #{tpu_custom_call.1} parent=47 // pred_check_branch
          %662 = sbr.rel (%p660) target = $region52
        $region51: #{tpu_custom_call.1} parent=47 // pred_region
          %s663 = sand.u32 %s113, 1
          %s664 = scalar_lea.sflag [#allocation7], %s663
          %s665 = sand.u32 %s113, 1
          %s666 = smul.addr %s665, 32
          %s667 = scalar_lea.vmem [#allocation8], %s666
          %668 = dma.done %s664, 512
        $region52: #{tpu_custom_call.1} parent=47 // pred_fallthru
          _
      $region48: #{tpu_custom_call.1} parent=5 // pred_fallthru
        _
    $region6: #{tpu_custom_call.1} parent=1 // loop_footer
      %s19 = sadd.s32 1, %s15
    $region7: #{tpu_custom_call.1} parent=1 // loop_footer_branch
      %14 = sbr.rel target = $region3
    $region8: #{tpu_custom_call.1} parent=1 // loop_exit
      _
    %669 = vsyncpa [#allocation6], 1
    %s670 = scalar_lea.sflag [#allocation6], 1
    %671 = vsyncpa %s670, 1
    %672 = vsyncpa [#allocation7], 1
    %s673 = scalar_lea.sflag [#allocation7], 1
    %674 = vsyncpa %s673, 1

</llo_original>
